<compile_context>
chip_gen: v6e
topology: v6e:2x2x1
jax: 0.10.0
libtpu: 0.0.40
codegen_flags: <defaults>
</compile_context>

<pallas_src>
import functools

import jax
import jax.numpy as jnp
from jax.experimental import pallas as pl
from jax.experimental.pallas import tpu as pltpu


# ---------------------------------------------------------------------------
# Kernel 1: FeatureEncoder (node Linear) + GNNPreMP (Linear + ReLU)
# ---------------------------------------------------------------------------
def _encoder_premp_kernel(xr_ref, wne_ref, bne_ref, wpre_ref, bpre_ref, out_ref):
    # TODO(synk): GraphGym GeneralLayer batchnorm inside GNNPreMP is omitted.
    h = jnp.dot(xr_ref[...], wne_ref[...],
                preferred_element_type=jnp.float32) + bne_ref[...]
    h = jnp.dot(h, wpre_ref[...],
                preferred_element_type=jnp.float32) + bpre_ref[...]
    out_ref[...] = jnp.maximum(h, 0.0)


def _encoder_premp(x_raw, w_ne, b_ne, w_pre, b_pre, *, tile_n):
    n, d_in_raw = x_raw.shape
    d_inner = w_ne.shape[1]
    return pl.pallas_call(
        _encoder_premp_kernel,
        out_shape=jax.ShapeDtypeStruct((n, d_inner), jnp.float32),
        grid_spec=pltpu.PrefetchScalarGridSpec(
            num_scalar_prefetch=0,
            grid=(n // tile_n,),
            in_specs=[
                pl.BlockSpec((tile_n, d_in_raw), lambda i: (i, 0)),
                pl.BlockSpec((d_in_raw, d_inner), lambda i: (0, 0)),
                pl.BlockSpec((1, d_inner), lambda i: (0, 0)),
                pl.BlockSpec((d_inner, d_inner), lambda i: (0, 0)),
                pl.BlockSpec((1, d_inner), lambda i: (0, 0)),
            ],
            out_specs=pl.BlockSpec((tile_n, d_inner), lambda i: (i, 0)),
        ),
        compiler_params=pltpu.CompilerParams(
            dimension_semantics=("parallel",)),
    )(x_raw, w_ne, b_ne, w_pre, b_pre)


# ---------------------------------------------------------------------------
# Kernel 2: one GINEConvLayer (+ fused node head on the last layer)
# ---------------------------------------------------------------------------
def _gine_layer_kernel(we_ref, be_ref, planes_ref, xj_ref, xti_ref,
                       w1t_ref, b1t_ref, w2t_ref, b2t_ref, *rest,
                       n_edge_feat, d_inner, with_head):
    if with_head:
        wht_ref, bht_ref, xt_out_ref, head_ref, acc_ref = rest
    else:
        xt_out_ref, acc_ref = rest
        wht_ref = bht_ref = head_ref = None

    j = pl.program_id(1)
    nj = pl.num_programs(1)

    @pl.when(j == 0)
    def _init():
        acc_ref[...] = jnp.zeros_like(acc_ref)

    # --- GINE message + aggregation for this (dst block i, src block j) tile.
    # planes_ref block: (K+1, tile_j, tile_i), channel-major & transposed:
    #   planes[k, j_src, i_dst] = E_raw[i, j, k]   (k < K)
    #   planes[K, j_src, i_dst] = A[i, j]          (adjacency plane)
    # Lane (minor) dim = destination tile -> full lane density for every op.
    rows = []
    for d in range(d_inner):                         # static unroll over features
        # enc_d[j, i] = sum_k E[i, j, k] * We[k, d] + be[d]   (scalar FMAs)
        enc = planes_ref[0] * we_ref[0, d] + be_ref[0, d]
        for k in range(1, n_edge_feat):
            enc = enc + planes_ref[k] * we_ref[k, d]
        # msg_d[j, i] = ReLU(x[j, d] + enc_d[j, i])
        msg = jnp.maximum(enc + xj_ref[:, d:d + 1], 0.0)
        # adjacency mask + reduction over source nodes j (sublane reduce, XLU)
        rows.append(jnp.sum(msg * planes_ref[n_edge_feat], axis=0,
                            keepdims=True))          # (1, tile_i)
    acc_ref[...] += jnp.concatenate(rows, axis=0)    # (D, tile_i)

    # --- GIN MLP + post-conv ReLU + residual (+ node head), transposed space.
    @pl.when(j == nj - 1)
    def _epilogue():
        x_it = xti_ref[...]                          # (D, tile_i) = x_i^T
        h = x_it + acc_ref[...]                      # eps = 0
        h = jnp.maximum(
            jnp.dot(w1t_ref[...], h, preferred_element_type=jnp.float32)
            + b1t_ref[...], 0.0)
        h = jnp.dot(w2t_ref[...], h,
                    preferred_element_type=jnp.float32) + b2t_ref[...]
        # dropout(p=0) skipped (eval mode); post-conv ReLU; residual
        new_xt = x_it + jnp.maximum(h, 0.0)
        xt_out_ref[...] = new_xt
        if with_head:                                # statically specialized
            head_ref[...] = (
                jnp.dot(wht_ref[...], new_xt,
                        preferred_element_type=jnp.float32) + bht_ref[...])


def _gine_layer(planes, x, x_t, w_e, b_e, w1, b1, w2, b2,
                head_w=None, head_b=None, *, tile_i, tile_j):
    n, d_inner = x.shape
    k_aug = planes.shape[0]
    n_edge_feat = k_aug - 1
    with_head = head_w is not None

    smem = pl.BlockSpec(memory_space=pltpu.MemorySpace.SMEM)
    in_specs = [
        smem,                                                        # We (SMEM scalars)
        smem,                                                        # be (SMEM scalars)
        pl.BlockSpec((k_aug, tile_j, tile_i), lambda i, j: (0, j, i)),  # edge planes
        pl.BlockSpec((tile_j, d_inner), lambda i, j: (j, 0)),        # x   (node-major)
        pl.BlockSpec((d_inner, tile_i), lambda i, j: (0, i)),        # x^T (feat-major)
        pl.BlockSpec((d_inner, d_inner), lambda i, j: (0, 0)),       # W1^T
        pl.BlockSpec((d_inner, 1), lambda i, j: (0, 0)),             # b1^T
        pl.BlockSpec((d_inner, d_inner), lambda i, j: (0, 0)),       # W2^T
        pl.BlockSpec((d_inner, 1), lambda i, j: (0, 0)),             # b2^T
    ]
    args = [w_e, b_e, planes, x, x_t, w1.T, b1.T, w2.T, b2.T]

    out_shape = [jax.ShapeDtypeStruct((d_inner, n), jnp.float32)]
    out_specs = [pl.BlockSpec((d_inner, tile_i), lambda i, j: (0, i))]
    if with_head:
        d_out_p = head_w.shape[0]
        in_specs += [
            pl.BlockSpec((d_out_p, d_inner), lambda i, j: (0, 0)),   # Wh^T (padded)
            pl.BlockSpec((d_out_p, 1), lambda i, j: (0, 0)),         # bh^T (padded)
        ]
        args += [head_w, head_b]
        out_shape.append(jax.ShapeDtypeStruct((d_out_p, n), jnp.float32))
        out_specs.append(pl.BlockSpec((d_out_p, tile_i), lambda i, j: (0, i)))

    kernel = functools.partial(
        _gine_layer_kernel, n_edge_feat=n_edge_feat, d_inner=d_inner,
        with_head=with_head)

    return pl.pallas_call(
        kernel,
        out_shape=tuple(out_shape) if with_head else out_shape[0],
        grid_spec=pltpu.PrefetchScalarGridSpec(
            num_scalar_prefetch=0,
            grid=(n // tile_i, n // tile_j),      # reduction axis (j) last
            in_specs=in_specs,
            out_specs=tuple(out_specs) if with_head else out_specs[0],
            scratch_shapes=[pltpu.VMEM((d_inner, tile_i), jnp.float32)],
        ),
        compiler_params=pltpu.CompilerParams(
            # i-blocks within a layer are independent -> parallel (megacore);
            # j is the aggregation reduction -> arbitrary.
            dimension_semantics=("parallel", "arbitrary")),
    )(*args)


# ---------------------------------------------------------------------------
# Wrapper
# ---------------------------------------------------------------------------
def _pick_lane_tile(n):
    for t in (256, 128):
        if n % t == 0:
            return t
    return n


def _pick_sublane_tile(n):
    for t in (256, 128, 64, 32, 16, 8):
        if t <= n and n % t == 0:
            return t
    return n


def custom_gnn_forward(params, x_raw, adj, e_raw, *,
                       tile_i=None, tile_j=None, tile_n=None):
    """CustomGNN (gineconv) forward. Returns node-head logits [N, dim_out]."""
    n, _ = x_raw.shape
    w_ne, b_ne = params["node_enc"]
    w_e, b_e = params["edge_enc"]
    w_pre, b_pre = params["pre_mp"]
    wh, bh = params["head"]
    d_inner = w_ne.shape[1]
    dim_out = wh.shape[1]
    n_layers = len(params["gine"])
    assert n_layers >= 1

    if tile_i is None:
        tile_i = _pick_lane_tile(n)
    if tile_j is None:
        tile_j = _pick_sublane_tile(n)
    if tile_n is None:
        tile_n = _pick_sublane_tile(n)
    assert n % tile_i == 0 and n % tile_j == 0 and n % tile_n == 0

    # --- layout plumbing (cheap one-time XLA): channel-major, transposed edge
    # planes so the kernel's minor dim is the destination-node tile.
    #   planes[k, j, i] = e_raw[i, j, k]  (k < K);  planes[K, j, i] = adj[i, j]
    planes = jnp.concatenate(
        [jnp.transpose(e_raw, (2, 1, 0)), adj.T[None, :, :]],
        axis=0).astype(jnp.float32)

    # Head weights, transposed and sublane-padded (output lanes = node tile).
    d_out_p = ((dim_out + 7) // 8) * 8
    wh_t = jnp.zeros((d_out_p, d_inner), jnp.float32).at[:dim_out, :].set(wh.T)
    bh_t = jnp.zeros((d_out_p, 1), jnp.float32).at[:dim_out, :].set(bh.T)

    # --- FeatureEncoder + GNNPreMP
    x = _encoder_premp(x_raw, w_ne, b_ne, w_pre, b_pre, tile_n=tile_n)
    x_t = x.T

    # --- message-passing layers (one pallas_call per layer)
    head_t = None
    for l, (w1, b1, w2, b2) in enumerate(params["gine"]):
        last = l == n_layers - 1
        outs = _gine_layer(
            planes, x, x_t, w_e, b_e, w1, b1, w2, b2,
            head_w=wh_t if last else None,
            head_b=bh_t if last else None,
            tile_i=tile_i, tile_j=tile_j)
        if last:
            x_t, head_t = outs
        else:
            x_t = outs
            x = x_t.T                      # tiny XLA re-layout between layers

    return head_t[:dim_out, :].T


# ---------------------------------------------------------------------------
# Params + pure-JAX reference
# ---------------------------------------------------------------------------
def init_params(key, dim_in_raw, edge_dim_raw, dim_inner, dim_out, layers_mp):
    def lin_init(k, din, dout, scale=0.1):
        kw, _ = jax.random.split(k)
        w = (scale * jax.random.normal(kw, (din, dout))).astype(jnp.float32)
        b = jnp.zeros((1, dout), jnp.float32)
        return w, b

    keys = jax.random.split(key, 4 + 2 * layers_mp)
    params = {
        "node_enc": lin_init(keys[0], dim_in_raw, dim_inner),
        "edge_enc": lin_init(keys[1], edge_dim_raw, dim_inner),
        "pre_mp": lin_init(keys[2], dim_inner, dim_inner),
        "head": lin_init(keys[3], dim_inner, dim_out),
        "gine": [],
    }
    for l in range(layers_mp):
        w1, b1 = lin_init(keys[4 + 2 * l], dim_inner, dim_inner)
        w2, b2 = lin_init(keys[5 + 2 * l], dim_inner, dim_inner)
        params["gine"].append((w1, b1, w2, b2))
    return params


def custom_gnn_reference(params, x_raw, adj, e_raw):
    """Pure-JAX f32 reference of the same forward chain."""
    hp = "highest"
    w, b = params["node_enc"]
    x = jnp.dot(x_raw, w, precision=hp) + b
    wp, bp = params["pre_mp"]
    x = jnp.maximum(jnp.dot(x, wp, precision=hp) + bp, 0.0)
    we, be = params["edge_enc"]
    enc = jnp.einsum("ijk,kd->ijd", e_raw, we, precision=hp) + be
    for (w1, b1, w2, b2) in params["gine"]:
        msg = jnp.maximum(x[None, :, :] + enc, 0.0)
        agg = jnp.sum(msg * adj[:, :, None], axis=1)
        h = x + agg
        h = jnp.maximum(jnp.dot(h, w1, precision=hp) + b1, 0.0)
        h = jnp.dot(h, w2, precision=hp) + b2
        h = jnp.maximum(h, 0.0)
        x = x + h
    wh, bh = params["head"]
    return jnp.dot(x, wh, precision=hp) + bh


# ---------------------------------------------------------------------------
if __name__ == "__main__":
    N = 256           # nodes
    DIM_IN_RAW = 8    # raw node feature dim
    EDGE_DIM_RAW = 4  # raw edge feature dim
    DIM_INNER = 32    # cfg.gnn.dim_inner
    DIM_OUT = 4
    LAYERS_MP = 2

    key = jax.random.PRNGKey(0)
    k_param, k_x, k_e, k_adj = jax.random.split(key, 4)

    params = init_params(k_param, DIM_IN_RAW, EDGE_DIM_RAW, DIM_INNER, DIM_OUT,
                         LAYERS_MP)

    # Deterministic synthetic graph: ring edges + random extras, no self loops.
    x_raw = jax.random.normal(k_x, (N, DIM_IN_RAW), jnp.float32)
    e_raw = jax.random.normal(k_e, (N, N, EDGE_DIM_RAW), jnp.float32)
    idx = jnp.arange(N)
    ring = (jnp.zeros((N, N), jnp.float32)
            .at[idx, (idx + 1) % N].set(1.0)
            .at[idx, (idx - 1) % N].set(1.0))
    extra = (jax.random.uniform(k_adj, (N, N)) < 0.05).astype(jnp.float32)
    adj = jnp.clip(ring + extra, 0.0, 1.0)
    adj = adj * (1.0 - jnp.eye(N, dtype=jnp.float32))   # GINE default: no self loops
    e_raw = e_raw * adj[:, :, None]                     # edge feats only on edges

    # tile_i=128 (lanes, dst nodes), tile_j=64 (sublanes, src nodes)
    # -> grid (2, 4) per layer: exercises the parallel i axis and the
    #    j-accumulation / epilogue path.
    out = custom_gnn_forward(params, x_raw, adj, e_raw, tile_i=128, tile_j=64)
    out = jax.block_until_ready(out)
    assert out.shape == (N, DIM_OUT) and out.dtype == jnp.float32

    ref = custom_gnn_reference(params, x_raw, adj, e_raw)
    abs_err = float(jnp.max(jnp.abs(out - ref)))
    rel_err = abs_err / (float(jnp.max(jnp.abs(ref))) + 1e-6)
    assert rel_err < 5e-2, (
        f"kernel vs reference mismatch: max abs err = {abs_err}, rel = {rel_err}")
    print("KERNEL_OK")
</pallas_src>

<mosaic_0001>
module attributes {stable_mosaic.version = 11 : i64} {
  func.func @_encoder_premp_kernel(%arg0: i32, %arg1: memref<256x8xf32, #tpu.memory_space<vmem>>, %arg2: memref<8x32xf32, #tpu.memory_space<vmem>>, %arg3: memref<1x32xf32, #tpu.memory_space<vmem>>, %arg4: memref<32x32xf32, #tpu.memory_space<vmem>>, %arg5: memref<1x32xf32, #tpu.memory_space<vmem>>, %arg6: memref<256x32xf32, #tpu.memory_space<vmem>>) attributes {dimension_semantics = [#tpu.dimension_semantics<parallel>], iteration_bounds = array<i64: 1>, scalar_prefetch = 0 : i64, scratch_operands = 0 : i64, tpu.core_type = #tpu.core_type<tc>, window_params = [{transform_indices = @transform_0, window_bounds = array<i64: 256, 8>}, {pipeline_mode = #tpu.pipeline_mode<synchronous>, transform_indices = @transform_1, window_bounds = array<i64: 8, 32>}, {pipeline_mode = #tpu.pipeline_mode<synchronous>, transform_indices = @transform_2, window_bounds = array<i64: 1, 32>}, {pipeline_mode = #tpu.pipeline_mode<synchronous>, transform_indices = @transform_3, window_bounds = array<i64: 32, 32>}, {pipeline_mode = #tpu.pipeline_mode<synchronous>, transform_indices = @transform_4, window_bounds = array<i64: 1, 32>}, {transform_indices = @transform_5, window_bounds = array<i64: 256, 32>}]} {
    %c0 = arith.constant 0 : index
    %c0_0 = arith.constant 0 : index
    %0 = vector.load %arg1[%c0, %c0_0] : memref<256x8xf32, #tpu.memory_space<vmem>>, vector<256x8xf32>
    %c0_1 = arith.constant 0 : index
    %c0_2 = arith.constant 0 : index
    %1 = vector.load %arg2[%c0_1, %c0_2] : memref<8x32xf32, #tpu.memory_space<vmem>>, vector<8x32xf32>
    %cst = arith.constant dense<0.000000e+00> : vector<256x32xf32>
    %2 = tpu.matmul %0, %1, %cst {dimension_numbers = #tpu.dot_dimension_numbers<[1], [0], [0], [1], [0, 0, 1, 1], [], []>} : vector<256x8xf32>, vector<8x32xf32>, vector<256x32xf32> -> vector<256x32xf32>
    %c0_3 = arith.constant 0 : index
    %c0_4 = arith.constant 0 : index
    %3 = vector.load %arg3[%c0_3, %c0_4] : memref<1x32xf32, #tpu.memory_space<vmem>>, vector<1x32xf32>
    %4 = vector.broadcast %3 : vector<1x32xf32> to vector<256x32xf32>
    %5 = arith.addf %2, %4 : vector<256x32xf32>
    %c0_5 = arith.constant 0 : index
    %c0_6 = arith.constant 0 : index
    %6 = vector.load %arg4[%c0_5, %c0_6] : memref<32x32xf32, #tpu.memory_space<vmem>>, vector<32x32xf32>
    %cst_7 = arith.constant dense<0.000000e+00> : vector<256x32xf32>
    %7 = tpu.matmul %5, %6, %cst_7 {dimension_numbers = #tpu.dot_dimension_numbers<[1], [0], [0], [1], [0, 0, 1, 1], [], []>} : vector<256x32xf32>, vector<32x32xf32>, vector<256x32xf32> -> vector<256x32xf32>
    %c0_8 = arith.constant 0 : index
    %c0_9 = arith.constant 0 : index
    %8 = vector.load %arg5[%c0_8, %c0_9] : memref<1x32xf32, #tpu.memory_space<vmem>>, vector<1x32xf32>
    %9 = vector.broadcast %8 : vector<1x32xf32> to vector<256x32xf32>
    %10 = arith.addf %7, %9 : vector<256x32xf32>
    %cst_10 = arith.constant 0.000000e+00 : f32
    %11 = vector.broadcast %cst_10 : f32 to vector<256x32xf32>
    %12 = arith.maximumf %10, %11 : vector<256x32xf32>
    %c0_11 = arith.constant 0 : index
    %c0_12 = arith.constant 0 : index
    %13 = vector.load %arg6[%c0_11, %c0_12] : memref<256x32xf32, #tpu.memory_space<vmem>>, vector<256x32xf32>
    tpu.vector_store %arg6[%c0_11, %c0_12], %12 {strides = array<i32>} : memref<256x32xf32, #tpu.memory_space<vmem>>, vector<256x32xf32>,
    return
  }
  func.func @transform_0(%arg0: i32) -> (i32, i32) {
    %c0_i32 = arith.constant 0 : i32
    %c0_i32_0 = arith.constant 0 : i32
    return %arg0, %c0_i32 : i32, i32
  }
  func.func @transform_1(%arg0: i32) -> (i32, i32) {
    %c0_i32 = arith.constant 0 : i32
    %c0_i32_0 = arith.constant 0 : i32
    %c0_i32_1 = arith.constant 0 : i32
    return %c0_i32, %c0_i32_0 : i32, i32
  }
  func.func @transform_2(%arg0: i32) -> (i32, i32) {
    %c0_i32 = arith.constant 0 : i32
    %c0_i32_0 = arith.constant 0 : i32
    %c0_i32_1 = arith.constant 0 : i32
    return %c0_i32, %c0_i32_0 : i32, i32
  }
  func.func @transform_3(%arg0: i32) -> (i32, i32) {
    %c0_i32 = arith.constant 0 : i32
    %c0_i32_0 = arith.constant 0 : i32
    %c0_i32_1 = arith.constant 0 : i32
    return %c0_i32, %c0_i32_0 : i32, i32
  }
  func.func @transform_4(%arg0: i32) -> (i32, i32) {
    %c0_i32 = arith.constant 0 : i32
    %c0_i32_0 = arith.constant 0 : i32
    %c0_i32_1 = arith.constant 0 : i32
    return %c0_i32, %c0_i32_0 : i32, i32
  }
  func.func @transform_5(%arg0: i32) -> (i32, i32) {
    %c0_i32 = arith.constant 0 : i32
    %c0_i32_0 = arith.constant 0 : i32
    return %arg0, %c0_i32 : i32, i32
  }
}

</mosaic_0001>

<llo_original>
// kernel: tpu_custom_call.1
$region0: #{tpu_custom_call.1}
  #allocation0 [shape = 'u32[]', space=smem, size = 0x4, offset = 0x4, fixed_abs, tag = 'smem constant byte address 0x4 - core index']
  #allocation1 [shape = 'u32[144,128]{1,0:T(1,128)}', space=vmem, size = 0x12000, scoped, tag = 'internal scratch']
  %s0 = inlined_call_operand.vmem [shape: f32[256,8], index: 0, kind: input, shape index: {}]
  %s1 = inlined_call_operand.vmem [shape: f32[8,32], index: 1, kind: input, shape index: {}]
  %s2 = inlined_call_operand.vmem [shape: f32[1,32], index: 2, kind: input, shape index: {}]
  %s3 = inlined_call_operand.vmem [shape: f32[32,32], index: 3, kind: input, shape index: {}]
  %s4 = inlined_call_operand.vmem [shape: f32[1,32], index: 4, kind: input, shape index: {}]
  %s5 = inlined_call_operand.vmem [shape: f32[256,32], index: 5, kind: output, shape index: {}]
  %s6 = sld [smem:[#allocation0]]
  $region30: #{tpu_custom_call.1} parent=0
    _
  %s8 = ssub.s32 1, %s6
  %s9 = scalar_select 0, %s8, %s6
  // Predicated region
  $region2: #{tpu_custom_call.1} parent=0 // pred_check
    _
  $region3: #{tpu_custom_call.1} parent=0 // pred_check_branch
    %11 = sbr.rel (0) target = $region5
  $region4: #{tpu_custom_call.1} parent=0 // pred_region
    _
  $region5: #{tpu_custom_call.1} parent=0 // pred_fallthru
    _
  // Predicated region
  $region6: #{tpu_custom_call.1} parent=0 // pred_check
    _
  $region7: #{tpu_custom_call.1} parent=0 // pred_check_branch
    %13 = sbr.rel (0) target = $region9
  $region8: #{tpu_custom_call.1} parent=0 // pred_region
    _
  $region9: #{tpu_custom_call.1} parent=0 // pred_fallthru
    _
  // Predicated region
  $region10: #{tpu_custom_call.1} parent=0 // pred_check
    _
  $region11: #{tpu_custom_call.1} parent=0 // pred_check_branch
    %15 = sbr.rel (0) target = $region13
  $region12: #{tpu_custom_call.1} parent=0 // pred_region
    _
  $region13: #{tpu_custom_call.1} parent=0 // pred_fallthru
    _
  // Predicated region
  $region14: #{tpu_custom_call.1} parent=0 // pred_check
    _
  $region15: #{tpu_custom_call.1} parent=0 // pred_check_branch
    %17 = sbr.rel (0) target = $region17
  $region16: #{tpu_custom_call.1} parent=0 // pred_region
    _
  $region17: #{tpu_custom_call.1} parent=0 // pred_fallthru
    _
  // Predicated region
  $region18: #{tpu_custom_call.1} parent=0 // pred_check
    _
  $region19: #{tpu_custom_call.1} parent=0 // pred_check_branch
    %19 = sbr.rel (0) target = $region21
  $region20: #{tpu_custom_call.1} parent=0 // pred_region
    _
  $region21: #{tpu_custom_call.1} parent=0 // pred_fallthru
    _
  %v20 = vld [vmem:[%s0] sm:$0xff]
  %v21 = vld [vmem:[%s0 + $0x8] sm:$0xff]
  %v22 = vld [vmem:[%s0 + $0x10] sm:$0xff]
  %v23 = vld [vmem:[%s0 + $0x18] sm:$0xff]
  %v24 = vld [vmem:[%s0 + $0x20] sm:$0xff]
  %v25 = vld [vmem:[%s0 + $0x28] sm:$0xff]
  %v26 = vld [vmem:[%s0 + $0x30] sm:$0xff]
  %v27 = vld [vmem:[%s0 + $0x38] sm:$0xff]
  %v28 = vld [vmem:[%s0 + $0x40] sm:$0xff]
  %v29 = vld [vmem:[%s0 + $0x48] sm:$0xff]
  %v30 = vld [vmem:[%s0 + $0x50] sm:$0xff]
  %v31 = vld [vmem:[%s0 + $0x58] sm:$0xff]
  %v32 = vld [vmem:[%s0 + $0x60] sm:$0xff]
  %v33 = vld [vmem:[%s0 + $0x68] sm:$0xff]
  %v34 = vld [vmem:[%s0 + $0x70] sm:$0xff]
  %v35 = vld [vmem:[%s0 + $0x78] sm:$0xff]
  %v36 = vld [vmem:[%s0 + $0x80] sm:$0xff]
  %v37 = vld [vmem:[%s0 + $0x88] sm:$0xff]
  %v38 = vld [vmem:[%s0 + $0x90] sm:$0xff]
  %v39 = vld [vmem:[%s0 + $0x98] sm:$0xff]
  %v40 = vld [vmem:[%s0 + $0xa0] sm:$0xff]
  %v41 = vld [vmem:[%s0 + $0xa8] sm:$0xff]
  %v42 = vld [vmem:[%s0 + $0xb0] sm:$0xff]
  %v43 = vld [vmem:[%s0 + $0xb8] sm:$0xff]
  %v44 = vld [vmem:[%s0 + $0xc0] sm:$0xff]
  %v45 = vld [vmem:[%s0 + $0xc8] sm:$0xff]
  %v46 = vld [vmem:[%s0 + $0xd0] sm:$0xff]
  %v47 = vld [vmem:[%s0 + $0xd8] sm:$0xff]
  %v48 = vld [vmem:[%s0 + $0xe0] sm:$0xff]
  %v49 = vld [vmem:[%s0 + $0xe8] sm:$0xff]
  %v50 = vld [vmem:[%s0 + $0xf0] sm:$0xff]
  %v51 = vld [vmem:[%s0 + $0xf8] sm:$0xff]
  %v52 = vld [vmem:[%s1] sm:$0xff]
  %v53 = vld [vmem:[%s2] sm:$0x1]
  %v55 = vlaneseq
  %v56 = vshrl.u32 %v55, 7
  %v57 = vsub.s32 0, %v56
  %v58 = vrot.slane %v53, %v57
  %vm60 = vcmask 64512
  %v62 = vsel %vm60, %v20, 0
  %v65 = vsel %vm60, %v21, 0
  %v68 = vsel %vm60, %v22, 0
  %v71 = vsel %vm60, %v23, 0
  %v74 = vsel %vm60, %v24, 0
  %v77 = vsel %vm60, %v25, 0
  %v80 = vsel %vm60, %v26, 0
  %v83 = vsel %vm60, %v27, 0
  %v86 = vsel %vm60, %v28, 0
  %v89 = vsel %vm60, %v29, 0
  %v92 = vsel %vm60, %v30, 0
  %v95 = vsel %vm60, %v31, 0
  %v98 = vsel %vm60, %v32, 0
  %v101 = vsel %vm60, %v33, 0
  %v104 = vsel %vm60, %v34, 0
  %v107 = vsel %vm60, %v35, 0
  %v110 = vsel %vm60, %v36, 0
  %v113 = vsel %vm60, %v37, 0
  %v116 = vsel %vm60, %v38, 0
  %v119 = vsel %vm60, %v39, 0
  %v122 = vsel %vm60, %v40, 0
  %v125 = vsel %vm60, %v41, 0
  %v128 = vsel %vm60, %v42, 0
  %v131 = vsel %vm60, %v43, 0
  %v134 = vsel %vm60, %v44, 0
  %v137 = vsel %vm60, %v45, 0
  %v140 = vsel %vm60, %v46, 0
  %v143 = vsel %vm60, %v47, 0
  %v146 = vsel %vm60, %v48, 0
  %v149 = vsel %vm60, %v49, 0
  %v152 = vsel %vm60, %v50, 0
  %v155 = vsel %vm60, %v51, 0
  %157 = vmatprep.subr.mxu0 0.0
  %158 = vmatpush1.msra.mxu0 0.0
  %159 = vmatprep.subr.mxu0 0.0
  %160 = vmatpush1.msra.mxu0 0.0
  %161 = vmatprep.subr.mxu0 0.0
  %162 = vmatpush1.msra.mxu0 0.0
  %163 = vmatprep.subr.mxu0 0.0
  %164 = vmatpush1.msra.mxu0 0.0
  %165 = vmatprep.subr.mxu0 0.0
  %166 = vmatpush1.msra.mxu0 0.0
  %167 = vmatprep.subr.mxu0 0.0
  %168 = vmatpush1.msra.mxu0 0.0
  %169 = vmatprep.subr.mxu0 0.0
  %170 = vmatpush1.msra.mxu0 0.0
  %171 = vmatprep.subr.mxu0 0.0
  %172 = vmatpush1.msra.mxu0 0.0
  %173 = vmatprep.subr.mxu0 0.0
  %174 = vmatpush1.msra.mxu0 0.0
  %175 = vmatprep.subr.mxu0 0.0
  %176 = vmatpush1.msra.mxu0 0.0
  %177 = vmatprep.subr.mxu0 0.0
  %178 = vmatpush1.msra.mxu0 0.0
  %179 = vmatprep.subr.mxu0 0.0
  %180 = vmatpush1.msra.mxu0 0.0
  %181 = vmatprep.subr.mxu0 0.0
  %182 = vmatpush1.msra.mxu0 0.0
  %183 = vmatprep.subr.mxu0 0.0
  %184 = vmatpush1.msra.mxu0 0.0
  %185 = vmatprep.subr.mxu0 0.0
  %186 = vmatpush1.msra.mxu0 0.0
  %187 = vmatprep.subr.mxu0 0.0
  %188 = vmatpush1.msra.mxu0 %v52
  %189 = vmatprep.subr.mxu0 0.0
  %190 = vmatpush2.msra.mxu0 0.0
  %191 = vmatprep.subr.mxu0 0.0
  %192 = vmatpush2.msra.mxu0 0.0
  %193 = vmatprep.subr.mxu0 0.0
  %194 = vmatpush2.msra.mxu0 0.0
  %195 = vmatprep.subr.mxu0 0.0
  %196 = vmatpush2.msra.mxu0 0.0
  %197 = vmatprep.subr.mxu0 0.0
  %198 = vmatpush2.msra.mxu0 0.0
  %199 = vmatprep.subr.mxu0 0.0
  %200 = vmatpush2.msra.mxu0 0.0
  %201 = vmatprep.subr.mxu0 0.0
  %202 = vmatpush2.msra.mxu0 0.0
  %203 = vmatprep.subr.mxu0 0.0
  %204 = vmatpush2.msra.mxu0 0.0
  %205 = vmatprep.subr.mxu0 0.0
  %206 = vmatpush2.msra.mxu0 0.0
  %207 = vmatprep.subr.mxu0 0.0
  %208 = vmatpush2.msra.mxu0 0.0
  %209 = vmatprep.subr.mxu0 0.0
  %210 = vmatpush2.msra.mxu0 0.0
  %211 = vmatprep.subr.mxu0 0.0
  %212 = vmatpush2.msra.mxu0 0.0
  %213 = vmatprep.subr.mxu0 0.0
  %214 = vmatpush2.msra.mxu0 0.0
  %215 = vmatprep.subr.mxu0 0.0
  %216 = vmatpush2.msra.mxu0 0.0
  %217 = vmatprep.subr.mxu0 0.0
  %218 = vmatpush2.msra.mxu0 0.0
  %219 = vmatprep.subr.mxu0 0.0
  %220 = vmatpush2.msra.mxu0 0.0
  %221 = vmatprep.mubr.f32.mxu0 0.0
  %222 = vmatmul.mubr.f32.gmra.mxu0 %v62
  %v223 = vpop.f32.mrf.mxu0
  %v224 = vadd.f32 %v58, %v223
  %v225 = vpop.f32.mrf.mxu0
  %226 = vmatprep.mubr.f32.mxu0 0.0
  %227 = vmatmul.mubr.f32.gmra.mxu0 %v65
  %v228 = vpop.f32.mrf.mxu0
  %v229 = vadd.f32 %v58, %v228
  %v230 = vpop.f32.mrf.mxu0
  %231 = vmatprep.mubr.f32.mxu0 0.0
  %232 = vmatmul.mubr.f32.gmra.mxu0 %v68
  %v233 = vpop.f32.mrf.mxu0
  %v234 = vadd.f32 %v58, %v233
  %v235 = vpop.f32.mrf.mxu0
  %236 = vmatprep.mubr.f32.mxu0 0.0
  %237 = vmatmul.mubr.f32.gmra.mxu0 %v71
  %v238 = vpop.f32.mrf.mxu0
  %v239 = vadd.f32 %v58, %v238
  %v240 = vpop.f32.mrf.mxu0
  %241 = vmatprep.mubr.f32.mxu0 0.0
  %242 = vmatmul.mubr.f32.gmra.mxu0 %v74
  %v243 = vpop.f32.mrf.mxu0
  %v244 = vadd.f32 %v58, %v243
  %v245 = vpop.f32.mrf.mxu0
  %246 = vmatprep.mubr.f32.mxu0 0.0
  %247 = vmatmul.mubr.f32.gmra.mxu0 %v77
  %v248 = vpop.f32.mrf.mxu0
  %v249 = vadd.f32 %v58, %v248
  %v250 = vpop.f32.mrf.mxu0
  %251 = vmatprep.mubr.f32.mxu0 0.0
  %252 = vmatmul.mubr.f32.gmra.mxu0 %v80
  %v253 = vpop.f32.mrf.mxu0
  %v254 = vadd.f32 %v58, %v253
  %v255 = vpop.f32.mrf.mxu0
  %256 = vmatprep.mubr.f32.mxu0 0.0
  %257 = vmatmul.mubr.f32.gmra.mxu0 %v83
  %v258 = vpop.f32.mrf.mxu0
  %v259 = vadd.f32 %v58, %v258
  %v260 = vpop.f32.mrf.mxu0
  %261 = vmatprep.mubr.f32.mxu0 0.0
  %262 = vmatmul.mubr.f32.gmra.mxu0 %v86
  %v263 = vpop.f32.mrf.mxu0
  %v264 = vadd.f32 %v58, %v263
  %v265 = vpop.f32.mrf.mxu0
  %266 = vmatprep.mubr.f32.mxu0 0.0
  %267 = vmatmul.mubr.f32.gmra.mxu0 %v89
  %v268 = vpop.f32.mrf.mxu0
  %v269 = vadd.f32 %v58, %v268
  %v270 = vpop.f32.mrf.mxu0
  %271 = vmatprep.mubr.f32.mxu0 0.0
  %272 = vmatmul.mubr.f32.gmra.mxu0 %v92
  %v273 = vpop.f32.mrf.mxu0
  %v274 = vadd.f32 %v58, %v273
  %v275 = vpop.f32.mrf.mxu0
  %276 = vmatprep.mubr.f32.mxu0 0.0
  %277 = vmatmul.mubr.f32.gmra.mxu0 %v95
  %v278 = vpop.f32.mrf.mxu0
  %v279 = vadd.f32 %v58, %v278
  %v280 = vpop.f32.mrf.mxu0
  %281 = vmatprep.mubr.f32.mxu0 0.0
  %282 = vmatmul.mubr.f32.gmra.mxu0 %v98
  %v283 = vpop.f32.mrf.mxu0
  %v284 = vadd.f32 %v58, %v283
  %v285 = vpop.f32.mrf.mxu0
  %286 = vmatprep.mubr.f32.mxu0 0.0
  %287 = vmatmul.mubr.f32.gmra.mxu0 %v101
  %v288 = vpop.f32.mrf.mxu0
  %v289 = vadd.f32 %v58, %v288
  %v290 = vpop.f32.mrf.mxu0
  %291 = vmatprep.mubr.f32.mxu0 0.0
  %292 = vmatmul.mubr.f32.gmra.mxu0 %v104
  %v293 = vpop.f32.mrf.mxu0
  %v294 = vadd.f32 %v58, %v293
  %v295 = vpop.f32.mrf.mxu0
  %296 = vmatprep.mubr.f32.mxu0 0.0
  %297 = vmatmul.mubr.f32.gmra.mxu0 %v107
  %v298 = vpop.f32.mrf.mxu0
  %v299 = vadd.f32 %v58, %v298
  %v300 = vpop.f32.mrf.mxu0
  %301 = vmatprep.mubr.f32.mxu0 0.0
  %302 = vmatmul.mubr.f32.gmra.mxu0 %v110
  %v303 = vpop.f32.mrf.mxu0
  %v304 = vadd.f32 %v58, %v303
  %v305 = vpop.f32.mrf.mxu0
  %306 = vmatprep.mubr.f32.mxu0 0.0
  %307 = vmatmul.mubr.f32.gmra.mxu0 %v113
  %v308 = vpop.f32.mrf.mxu0
  %v309 = vadd.f32 %v58, %v308
  %v310 = vpop.f32.mrf.mxu0
  %311 = vmatprep.mubr.f32.mxu0 0.0
  %312 = vmatmul.mubr.f32.gmra.mxu0 %v116
  %v313 = vpop.f32.mrf.mxu0
  %v314 = vadd.f32 %v58, %v313
  %v315 = vpop.f32.mrf.mxu0
  %316 = vmatprep.mubr.f32.mxu0 0.0
  %317 = vmatmul.mubr.f32.gmra.mxu0 %v119
  %v318 = vpop.f32.mrf.mxu0
  %v319 = vadd.f32 %v58, %v318
  %v320 = vpop.f32.mrf.mxu0
  %321 = vmatprep.mubr.f32.mxu0 0.0
  %322 = vmatmul.mubr.f32.gmra.mxu0 %v122
  %v323 = vpop.f32.mrf.mxu0
  %v324 = vadd.f32 %v58, %v323
  %v325 = vpop.f32.mrf.mxu0
  %326 = vmatprep.mubr.f32.mxu0 0.0
  %327 = vmatmul.mubr.f32.gmra.mxu0 %v125
  %v328 = vpop.f32.mrf.mxu0
  %v329 = vadd.f32 %v58, %v328
  %v330 = vpop.f32.mrf.mxu0
  %331 = vmatprep.mubr.f32.mxu0 0.0
  %332 = vmatmul.mubr.f32.gmra.mxu0 %v128
  %v333 = vpop.f32.mrf.mxu0
  %v334 = vadd.f32 %v58, %v333
  %v335 = vpop.f32.mrf.mxu0
  %336 = vmatprep.mubr.f32.mxu0 0.0
  %337 = vmatmul.mubr.f32.gmra.mxu0 %v131
  %v338 = vpop.f32.mrf.mxu0
  %v339 = vadd.f32 %v58, %v338
  %v340 = vpop.f32.mrf.mxu0
  %341 = vmatprep.mubr.f32.mxu0 0.0
  %342 = vmatmul.mubr.f32.gmra.mxu0 %v134
  %v343 = vpop.f32.mrf.mxu0
  %v344 = vadd.f32 %v58, %v343
  %v345 = vpop.f32.mrf.mxu0
  %346 = vmatprep.mubr.f32.mxu0 0.0
  %347 = vmatmul.mubr.f32.gmra.mxu0 %v137
  %v348 = vpop.f32.mrf.mxu0
  %v349 = vadd.f32 %v58, %v348
  %v350 = vpop.f32.mrf.mxu0
  %351 = vmatprep.mubr.f32.mxu0 0.0
  %352 = vmatmul.mubr.f32.gmra.mxu0 %v140
  %v353 = vpop.f32.mrf.mxu0
  %v354 = vadd.f32 %v58, %v353
  %v355 = vpop.f32.mrf.mxu0
  %356 = vmatprep.mubr.f32.mxu0 0.0
  %357 = vmatmul.mubr.f32.gmra.mxu0 %v143
  %v358 = vpop.f32.mrf.mxu0
  %v359 = vadd.f32 %v58, %v358
  %v360 = vpop.f32.mrf.mxu0
  %361 = vmatprep.mubr.f32.mxu0 0.0
  %362 = vmatmul.mubr.f32.gmra.mxu0 %v146
  %v363 = vpop.f32.mrf.mxu0
  %v364 = vadd.f32 %v58, %v363
  %v365 = vpop.f32.mrf.mxu0
  %366 = vmatprep.mubr.f32.mxu0 0.0
  %367 = vmatmul.mubr.f32.gmra.mxu0 %v149
  %v368 = vpop.f32.mrf.mxu0
  %v369 = vadd.f32 %v58, %v368
  %v370 = vpop.f32.mrf.mxu0
  %371 = vmatprep.mubr.f32.mxu0 0.0
  %372 = vmatmul.mubr.f32.gmra.mxu0 %v152
  %v373 = vpop.f32.mrf.mxu0
  %v374 = vadd.f32 %v58, %v373
  %v375 = vpop.f32.mrf.mxu0
  %376 = vmatprep.mubr.f32.mxu0 0.0
  %377 = vmatmul.mubr.f32.gmra.mxu0 %v155
  %v378 = vpop.f32.mrf.mxu0
  %v379 = vadd.f32 %v58, %v378
  %v380 = vpop.f32.mrf.mxu0
  %381 = vdwg.mxu0
  %v382 = vld [vmem:[%s3] sm:$0xff]
  %v383 = vld [vmem:[%s3 + $0x8] sm:$0xff]
  %v384 = vld [vmem:[%s3 + $0x10] sm:$0xff]
  %v385 = vld [vmem:[%s3 + $0x18] sm:$0xff]
  %v386 = vld [vmem:[%s4] sm:$0x1]
  %v388 = vlaneseq
  %v389 = vshrl.u32 %v388, 7
  %v390 = vsub.s32 0, %v389
  %v391 = vrot.slane %v386, %v390
  %vm393 = vcmask 261120
  %v395 = vsel %vm393, %v224, 0
  %v398 = vsel %vm393, %v229, 0
  %v401 = vsel %vm393, %v234, 0
  %v404 = vsel %vm393, %v239, 0
  %v407 = vsel %vm393, %v244, 0
  %v410 = vsel %vm393, %v249, 0
  %v413 = vsel %vm393, %v254, 0
  %v416 = vsel %vm393, %v259, 0
  %v419 = vsel %vm393, %v264, 0
  %v422 = vsel %vm393, %v269, 0
  %v425 = vsel %vm393, %v274, 0
  %v428 = vsel %vm393, %v279, 0
  %v431 = vsel %vm393, %v284, 0
  %v434 = vsel %vm393, %v289, 0
  %v437 = vsel %vm393, %v294, 0
  %v440 = vsel %vm393, %v299, 0
  %v443 = vsel %vm393, %v304, 0
  %v446 = vsel %vm393, %v309, 0
  %v449 = vsel %vm393, %v314, 0
  %v452 = vsel %vm393, %v319, 0
  %v455 = vsel %vm393, %v324, 0
  %v458 = vsel %vm393, %v329, 0
  %v461 = vsel %vm393, %v334, 0
  %v464 = vsel %vm393, %v339, 0
  %v467 = vsel %vm393, %v344, 0
  %v470 = vsel %vm393, %v349, 0
  %v473 = vsel %vm393, %v354, 0
  %v476 = vsel %vm393, %v359, 0
  %v479 = vsel %vm393, %v364, 0
  %v482 = vsel %vm393, %v369, 0
  %v485 = vsel %vm393, %v374, 0
  %v488 = vsel %vm393, %v379, 0
  %490 = vmatprep.subr.mxu0 0.0
  %491 = vmatpush1.msra.mxu0 0.0
  %492 = vmatprep.subr.mxu0 0.0
  %493 = vmatpush1.msra.mxu0 0.0
  %494 = vmatprep.subr.mxu0 0.0
  %495 = vmatpush1.msra.mxu0 0.0
  %496 = vmatprep.subr.mxu0 0.0
  %497 = vmatpush1.msra.mxu0 0.0
  %498 = vmatprep.subr.mxu0 0.0
  %499 = vmatpush1.msra.mxu0 0.0
  %500 = vmatprep.subr.mxu0 0.0
  %501 = vmatpush1.msra.mxu0 0.0
  %502 = vmatprep.subr.mxu0 0.0
  %503 = vmatpush1.msra.mxu0 0.0
  %504 = vmatprep.subr.mxu0 0.0
  %505 = vmatpush1.msra.mxu0 0.0
  %506 = vmatprep.subr.mxu0 0.0
  %507 = vmatpush1.msra.mxu0 0.0
  %508 = vmatprep.subr.mxu0 0.0
  %509 = vmatpush1.msra.mxu0 0.0
  %510 = vmatprep.subr.mxu0 0.0
  %511 = vmatpush1.msra.mxu0 0.0
  %512 = vmatprep.subr.mxu0 0.0
  %513 = vmatpush1.msra.mxu0 0.0
  %514 = vmatprep.subr.mxu0 0.0
  %515 = vmatpush1.msra.mxu0 %v385
  %516 = vmatprep.subr.mxu0 0.0
  %517 = vmatpush1.msra.mxu0 %v384
  %518 = vmatprep.subr.mxu0 0.0
  %519 = vmatpush1.msra.mxu0 %v383
  %520 = vmatprep.subr.mxu0 0.0
  %521 = vmatpush1.msra.mxu0 %v382
  %522 = vmatprep.subr.mxu0 0.0
  %523 = vmatpush2.msra.mxu0 0.0
  %524 = vmatprep.subr.mxu0 0.0
  %525 = vmatpush2.msra.mxu0 0.0
  %526 = vmatprep.subr.mxu0 0.0
  %527 = vmatpush2.msra.mxu0 0.0
  %528 = vmatprep.subr.mxu0 0.0
  %529 = vmatpush2.msra.mxu0 0.0
  %530 = vmatprep.subr.mxu0 0.0
  %531 = vmatpush2.msra.mxu0 0.0
  %532 = vmatprep.subr.mxu0 0.0
  %533 = vmatpush2.msra.mxu0 0.0
  %534 = vmatprep.subr.mxu0 0.0
  %535 = vmatpush2.msra.mxu0 0.0
  %536 = vmatprep.subr.mxu0 0.0
  %537 = vmatpush2.msra.mxu0 0.0
  %538 = vmatprep.subr.mxu0 0.0
  %539 = vmatpush2.msra.mxu0 0.0
  %540 = vmatprep.subr.mxu0 0.0
  %541 = vmatpush2.msra.mxu0 0.0
  %542 = vmatprep.subr.mxu0 0.0
  %543 = vmatpush2.msra.mxu0 0.0
  %544 = vmatprep.subr.mxu0 0.0
  %545 = vmatpush2.msra.mxu0 0.0
  %546 = vmatprep.subr.mxu0 0.0
  %547 = vmatpush2.msra.mxu0 0.0
  %548 = vmatprep.subr.mxu0 0.0
  %549 = vmatpush2.msra.mxu0 0.0
  %550 = vmatprep.subr.mxu0 0.0
  %551 = vmatpush2.msra.mxu0 0.0
  %552 = vmatprep.subr.mxu0 0.0
  %553 = vmatpush2.msra.mxu0 0.0
  %554 = vmatprep.mubr.f32.mxu0 0.0
  %555 = vmatmul.mubr.f32.gmra.mxu0 %v395
  %v556 = vpop.f32.mrf.mxu0
  %v557 = vadd.f32 %v391, %v556
  %v558 = vpop.f32.mrf.mxu0
  %559 = vmatprep.mubr.f32.mxu0 0.0
  %560 = vmatmul.mubr.f32.gmra.mxu0 %v398
  %v561 = vpop.f32.mrf.mxu0
  %v562 = vadd.f32 %v391, %v561
  %v563 = vpop.f32.mrf.mxu0
  %564 = vmatprep.mubr.f32.mxu0 0.0
  %565 = vmatmul.mubr.f32.gmra.mxu0 %v401
  %v566 = vpop.f32.mrf.mxu0
  %v567 = vadd.f32 %v391, %v566
  %v568 = vpop.f32.mrf.mxu0
  %569 = vmatprep.mubr.f32.mxu0 0.0
  %570 = vmatmul.mubr.f32.gmra.mxu0 %v404
  %v571 = vpop.f32.mrf.mxu0
  %v572 = vadd.f32 %v391, %v571
  %v573 = vpop.f32.mrf.mxu0
  %574 = vmatprep.mubr.f32.mxu0 0.0
  %575 = vmatmul.mubr.f32.gmra.mxu0 %v407
  %v576 = vpop.f32.mrf.mxu0
  %v577 = vadd.f32 %v391, %v576
  %v578 = vpop.f32.mrf.mxu0
  %579 = vmatprep.mubr.f32.mxu0 0.0
  %580 = vmatmul.mubr.f32.gmra.mxu0 %v410
  %v581 = vpop.f32.mrf.mxu0
  %v582 = vadd.f32 %v391, %v581
  %v583 = vpop.f32.mrf.mxu0
  %584 = vmatprep.mubr.f32.mxu0 0.0
  %585 = vmatmul.mubr.f32.gmra.mxu0 %v413
  %v586 = vpop.f32.mrf.mxu0
  %v587 = vadd.f32 %v391, %v586
  %v588 = vpop.f32.mrf.mxu0
  %589 = vmatprep.mubr.f32.mxu0 0.0
  %590 = vmatmul.mubr.f32.gmra.mxu0 %v416
  %v591 = vpop.f32.mrf.mxu0
  %v592 = vadd.f32 %v391, %v591
  %v593 = vpop.f32.mrf.mxu0
  %594 = vmatprep.mubr.f32.mxu0 0.0
  %595 = vmatmul.mubr.f32.gmra.mxu0 %v419
  %v596 = vpop.f32.mrf.mxu0
  %v597 = vadd.f32 %v391, %v596
  %v598 = vpop.f32.mrf.mxu0
  %599 = vmatprep.mubr.f32.mxu0 0.0
  %600 = vmatmul.mubr.f32.gmra.mxu0 %v422
  %v601 = vpop.f32.mrf.mxu0
  %v602 = vadd.f32 %v391, %v601
  %v603 = vpop.f32.mrf.mxu0
  %604 = vmatprep.mubr.f32.mxu0 0.0
  %605 = vmatmul.mubr.f32.gmra.mxu0 %v425
  %v606 = vpop.f32.mrf.mxu0
  %v607 = vadd.f32 %v391, %v606
  %v608 = vpop.f32.mrf.mxu0
  %609 = vmatprep.mubr.f32.mxu0 0.0
  %610 = vmatmul.mubr.f32.gmra.mxu0 %v428
  %v611 = vpop.f32.mrf.mxu0
  %v612 = vadd.f32 %v391, %v611
  %v613 = vpop.f32.mrf.mxu0
  %614 = vmatprep.mubr.f32.mxu0 0.0
  %615 = vmatmul.mubr.f32.gmra.mxu0 %v431
  %v616 = vpop.f32.mrf.mxu0
  %v617 = vadd.f32 %v391, %v616
  %v618 = vpop.f32.mrf.mxu0
  %619 = vmatprep.mubr.f32.mxu0 0.0
  %620 = vmatmul.mubr.f32.gmra.mxu0 %v434
  %v621 = vpop.f32.mrf.mxu0
  %v622 = vadd.f32 %v391, %v621
  %v623 = vpop.f32.mrf.mxu0
  %624 = vmatprep.mubr.f32.mxu0 0.0
  %625 = vmatmul.mubr.f32.gmra.mxu0 %v437
  %v626 = vpop.f32.mrf.mxu0
  %v627 = vadd.f32 %v391, %v626
  %v628 = vpop.f32.mrf.mxu0
  %629 = vmatprep.mubr.f32.mxu0 0.0
  %630 = vmatmul.mubr.f32.gmra.mxu0 %v440
  %v631 = vpop.f32.mrf.mxu0
  %v632 = vadd.f32 %v391, %v631
  %v633 = vpop.f32.mrf.mxu0
  %634 = vmatprep.mubr.f32.mxu0 0.0
  %635 = vmatmul.mubr.f32.gmra.mxu0 %v443
  %v636 = vpop.f32.mrf.mxu0
  %v637 = vadd.f32 %v391, %v636
  %v638 = vpop.f32.mrf.mxu0
  %639 = vmatprep.mubr.f32.mxu0 0.0
  %640 = vmatmul.mubr.f32.gmra.mxu0 %v446
  %v641 = vpop.f32.mrf.mxu0
  %v642 = vadd.f32 %v391, %v641
  %v643 = vpop.f32.mrf.mxu0
  %644 = vmatprep.mubr.f32.mxu0 0.0
  %645 = vmatmul.mubr.f32.gmra.mxu0 %v449
  %v646 = vpop.f32.mrf.mxu0
  %v647 = vadd.f32 %v391, %v646
  %v648 = vpop.f32.mrf.mxu0
  %649 = vmatprep.mubr.f32.mxu0 0.0
  %650 = vmatmul.mubr.f32.gmra.mxu0 %v452
  %v651 = vpop.f32.mrf.mxu0
  %v652 = vadd.f32 %v391, %v651
  %v653 = vpop.f32.mrf.mxu0
  %654 = vmatprep.mubr.f32.mxu0 0.0
  %655 = vmatmul.mubr.f32.gmra.mxu0 %v455
  %v656 = vpop.f32.mrf.mxu0
  %v657 = vadd.f32 %v391, %v656
  %v658 = vpop.f32.mrf.mxu0
  %659 = vmatprep.mubr.f32.mxu0 0.0
  %660 = vmatmul.mubr.f32.gmra.mxu0 %v458
  %v661 = vpop.f32.mrf.mxu0
  %v662 = vadd.f32 %v391, %v661
  %v663 = vpop.f32.mrf.mxu0
  %664 = vmatprep.mubr.f32.mxu0 0.0
  %665 = vmatmul.mubr.f32.gmra.mxu0 %v461
  %v666 = vpop.f32.mrf.mxu0
  %v667 = vadd.f32 %v391, %v666
  %v668 = vpop.f32.mrf.mxu0
  %669 = vmatprep.mubr.f32.mxu0 0.0
  %670 = vmatmul.mubr.f32.gmra.mxu0 %v464
  %v671 = vpop.f32.mrf.mxu0
  %v672 = vadd.f32 %v391, %v671
  %v673 = vpop.f32.mrf.mxu0
  %674 = vmatprep.mubr.f32.mxu0 0.0
  %675 = vmatmul.mubr.f32.gmra.mxu0 %v467
  %v676 = vpop.f32.mrf.mxu0
  %v677 = vadd.f32 %v391, %v676
  %v678 = vpop.f32.mrf.mxu0
  %679 = vmatprep.mubr.f32.mxu0 0.0
  %680 = vmatmul.mubr.f32.gmra.mxu0 %v470
  %v681 = vpop.f32.mrf.mxu0
  %v682 = vadd.f32 %v391, %v681
  %v683 = vpop.f32.mrf.mxu0
  %684 = vmatprep.mubr.f32.mxu0 0.0
  %685 = vmatmul.mubr.f32.gmra.mxu0 %v473
  %v686 = vpop.f32.mrf.mxu0
  %v687 = vadd.f32 %v391, %v686
  %v688 = vpop.f32.mrf.mxu0
  %689 = vmatprep.mubr.f32.mxu0 0.0
  %690 = vmatmul.mubr.f32.gmra.mxu0 %v476
  %v691 = vpop.f32.mrf.mxu0
  %v692 = vadd.f32 %v391, %v691
  %v693 = vpop.f32.mrf.mxu0
  %694 = vmatprep.mubr.f32.mxu0 0.0
  %695 = vmatmul.mubr.f32.gmra.mxu0 %v479
  %v696 = vpop.f32.mrf.mxu0
  %v697 = vadd.f32 %v391, %v696
  %v698 = vpop.f32.mrf.mxu0
  %699 = vmatprep.mubr.f32.mxu0 0.0
  %700 = vmatmul.mubr.f32.gmra.mxu0 %v482
  %v701 = vpop.f32.mrf.mxu0
  %v702 = vadd.f32 %v391, %v701
  %v703 = vpop.f32.mrf.mxu0
  %704 = vmatprep.mubr.f32.mxu0 0.0
  %705 = vmatmul.mubr.f32.gmra.mxu0 %v485
  %v706 = vpop.f32.mrf.mxu0
  %v707 = vadd.f32 %v391, %v706
  %v708 = vpop.f32.mrf.mxu0
  %709 = vmatprep.mubr.f32.mxu0 0.0
  %710 = vmatmul.mubr.f32.gmra.mxu0 %v488
  %v711 = vpop.f32.mrf.mxu0
  %v712 = vadd.f32 %v391, %v711
  %v713 = vpop.f32.mrf.mxu0
  %714 = vdwg.mxu0
  %v715 = vmax.f32 %v557, 0.0
  %v716 = vmax.f32 %v562, 0.0
  %v717 = vmax.f32 %v567, 0.0
  %v718 = vmax.f32 %v572, 0.0
  %v719 = vmax.f32 %v577, 0.0
  %v720 = vmax.f32 %v582, 0.0
  %v721 = vmax.f32 %v587, 0.0
  %v722 = vmax.f32 %v592, 0.0
  %v723 = vmax.f32 %v597, 0.0
  %v724 = vmax.f32 %v602, 0.0
  %v725 = vmax.f32 %v607, 0.0
  %v726 = vmax.f32 %v612, 0.0
  %v727 = vmax.f32 %v617, 0.0
  %v728 = vmax.f32 %v622, 0.0
  %v729 = vmax.f32 %v627, 0.0
  %v730 = vmax.f32 %v632, 0.0
  %v731 = vmax.f32 %v637, 0.0
  %v732 = vmax.f32 %v642, 0.0
  %v733 = vmax.f32 %v647, 0.0
  %v734 = vmax.f32 %v652, 0.0
  %v735 = vmax.f32 %v657, 0.0
  %v736 = vmax.f32 %v662, 0.0
  %v737 = vmax.f32 %v667, 0.0
  %v738 = vmax.f32 %v672, 0.0
  %v739 = vmax.f32 %v677, 0.0
  %v740 = vmax.f32 %v682, 0.0
  %v741 = vmax.f32 %v687, 0.0
  %v742 = vmax.f32 %v692, 0.0
  %v743 = vmax.f32 %v697, 0.0
  %v744 = vmax.f32 %v702, 0.0
  %v745 = vmax.f32 %v707, 0.0
  %v746 = vmax.f32 %v712, 0.0
  %747 = vst.msk [vmem:[%s5] sm:$0xff] %vm393, %v715
  %748 = vst.msk [vmem:[%s5 + $0x8] sm:$0xff] %vm393, %v716
  %749 = vst.msk [vmem:[%s5 + $0x10] sm:$0xff] %vm393, %v717
  %750 = vst.msk [vmem:[%s5 + $0x18] sm:$0xff] %vm393, %v718
  %751 = vst.msk [vmem:[%s5 + $0x20] sm:$0xff] %vm393, %v719
  %752 = vst.msk [vmem:[%s5 + $0x28] sm:$0xff] %vm393, %v720
  %753 = vst.msk [vmem:[%s5 + $0x30] sm:$0xff] %vm393, %v721
  %754 = vst.msk [vmem:[%s5 + $0x38] sm:$0xff] %vm393, %v722
  %755 = vst.msk [vmem:[%s5 + $0x40] sm:$0xff] %vm393, %v723
  %756 = vst.msk [vmem:[%s5 + $0x48] sm:$0xff] %vm393, %v724
  %757 = vst.msk [vmem:[%s5 + $0x50] sm:$0xff] %vm393, %v725
  %758 = vst.msk [vmem:[%s5 + $0x58] sm:$0xff] %vm393, %v726
  %759 = vst.msk [vmem:[%s5 + $0x60] sm:$0xff] %vm393, %v727
  %760 = vst.msk [vmem:[%s5 + $0x68] sm:$0xff] %vm393, %v728
  %761 = vst.msk [vmem:[%s5 + $0x70] sm:$0xff] %vm393, %v729
  %762 = vst.msk [vmem:[%s5 + $0x78] sm:$0xff] %vm393, %v730
  %763 = vst.msk [vmem:[%s5 + $0x80] sm:$0xff] %vm393, %v731
  %764 = vst.msk [vmem:[%s5 + $0x88] sm:$0xff] %vm393, %v732
  %765 = vst.msk [vmem:[%s5 + $0x90] sm:$0xff] %vm393, %v733
  %766 = vst.msk [vmem:[%s5 + $0x98] sm:$0xff] %vm393, %v734
  %767 = vst.msk [vmem:[%s5 + $0xa0] sm:$0xff] %vm393, %v735
  %768 = vst.msk [vmem:[%s5 + $0xa8] sm:$0xff] %vm393, %v736
  %769 = vst.msk [vmem:[%s5 + $0xb0] sm:$0xff] %vm393, %v737
  %770 = vst.msk [vmem:[%s5 + $0xb8] sm:$0xff] %vm393, %v738
  %771 = vst.msk [vmem:[%s5 + $0xc0] sm:$0xff] %vm393, %v739
  %772 = vst.msk [vmem:[%s5 + $0xc8] sm:$0xff] %vm393, %v740
  %773 = vst.msk [vmem:[%s5 + $0xd0] sm:$0xff] %vm393, %v741
  %774 = vst.msk [vmem:[%s5 + $0xd8] sm:$0xff] %vm393, %v742
  %775 = vst.msk [vmem:[%s5 + $0xe0] sm:$0xff] %vm393, %v743
  %776 = vst.msk [vmem:[%s5 + $0xe8] sm:$0xff] %vm393, %v744
  %777 = vst.msk [vmem:[%s5 + $0xf0] sm:$0xff] %vm393, %v745
  %778 = vst.msk [vmem:[%s5 + $0xf8] sm:$0xff] %vm393, %v746
  // Predicated region
  $region22: #{tpu_custom_call.1} parent=0 // pred_check
    _
  $region23: #{tpu_custom_call.1} parent=0 // pred_check_branch
    %780 = sbr.rel (0) target = $region25
  $region24: #{tpu_custom_call.1} parent=0 // pred_region
    _
  $region25: #{tpu_custom_call.1} parent=0 // pred_fallthru
    _
  // Predicated region
  $region26: #{tpu_custom_call.1} parent=0 // pred_check
    _
  $region27: #{tpu_custom_call.1} parent=0 // pred_check_branch
    %782 = sbr.rel (0) target = $region29
  $region28: #{tpu_custom_call.1} parent=0 // pred_region
    _
  $region29: #{tpu_custom_call.1} parent=0 // pred_fallthru
    _

</llo_original>
